<compile_context>
chip_gen: v7x
topology: tpu7x:2x2x1
jax: 0.10.0
libtpu: 0.0.40
codegen_flags: <defaults>
</compile_context>

<pallas_src>
import jax
import jax.numpy as jnp
from jax.experimental import pallas as pl
from jax.experimental.pallas import tpu as pltpu

_LANE_W = 1024                         # lane-dense last dim (8 sublanes * 128 lanes)
_TARGET_TILE_BYTES = 8 * 1024 * 1024   # ~8 MiB data per 2D tile (v6e/v7x sweet spot)
_TARGET_TILE_ELEMS_1D = 128 * 1024     # conservative 1D tile (layout-padding headroom)
_VMEM_LIMIT_BYTES = 48 * 1024 * 1024   # 2 in + 2 out 8 MiB buffers + slack (< 64 MiB v7x)


def _cdiv(a, b):
    return -(-a // b)


def _round_up(a, b):
    return _cdiv(a, b) * b


def _round_down(a, b):
    return (a // b) * b


def _copy_kernel(x_ref, o_ref):
    o_ref[...] = x_ref[...]


def _noop_alias_kernel(x_ref, o_ref):
    # Output buffer aliases the input buffer; nothing to move, no DMA issued.
    del x_ref, o_ref


def _identity_copy_2d(flat, rows, dtype):
    """Aligned path: lane-dense (rows, 1024) view, byte-budgeted row tiles."""
    itemsize = dtype.itemsize
    row_unit = 8 * max(1, 4 // itemsize)          # 8 (f32) / 16 (bf16) / 32 (int8)
    budget_rows = max(
        row_unit,
        _round_down(_TARGET_TILE_BYTES // (_LANE_W * itemsize), row_unit),
    )
    if rows >= 2 * row_unit:
        # At least 2 grid steps so "parallel" can shard across v7x's 2 TCs,
        # capped by the byte budget for large inputs.
        tile_rows = min(budget_rows, _round_up(_cdiv(rows, 2), row_unit))
    else:
        tile_rows = rows  # single full-extent block (block dim == array dim)

    grid = (_cdiv(rows, tile_rows),)  # last block (if partial) is masked by Pallas
    x2d = flat.reshape(rows, _LANE_W)

    out2d = pl.pallas_call(
        _copy_kernel,
        out_shape=jax.ShapeDtypeStruct((rows, _LANE_W), dtype),
        grid=grid,
        # Optional further tweak: pipeline_mode=pl.Buffered(3) on the input spec
        # can hide DMA issue latency; default double-buffering kept to stay well
        # within the v7x VMEM budget.
        in_specs=[pl.BlockSpec((tile_rows, _LANE_W), lambda i: (i, 0))],
        out_specs=pl.BlockSpec((tile_rows, _LANE_W), lambda i: (i, 0)),
        compiler_params=pltpu.CompilerParams(
            dimension_semantics=("parallel",),
            vmem_limit_bytes=_VMEM_LIMIT_BYTES,
        ),
    )(x2d)
    return out2d.reshape(-1)


def _identity_copy_1d(flat, total, dtype):
    """Misaligned path: 1D blocks with a masked partial last block (no padding)."""
    elem_unit = _LANE_W * max(1, 4 // dtype.itemsize)
    if total <= elem_unit:
        block = total                      # single full-extent block, no masking
        grid = (1,)
    else:
        budget = max(elem_unit, _round_down(_TARGET_TILE_ELEMS_1D, elem_unit))
        if total >= 2 * elem_unit:
            block = min(budget, _round_up(_cdiv(total, 2), elem_unit))
        else:
            block = elem_unit
        grid = (_cdiv(total, block),)      # last block masked by Pallas

    return pl.pallas_call(
        _copy_kernel,
        out_shape=jax.ShapeDtypeStruct((total,), dtype),
        grid=grid,
        in_specs=[pl.BlockSpec((block,), lambda i: (i,))],
        out_specs=pl.BlockSpec((block,), lambda i: (i,)),
        compiler_params=pltpu.CompilerParams(
            dimension_semantics=("parallel",),
            vmem_limit_bytes=_VMEM_LIMIT_BYTES,
        ),
    )(flat)


def identity_pallas(x):
    """Identity (Model.forward) as a streaming Pallas TPU copy (exactly R+W HBM)."""
    orig_shape = x.shape
    dtype = x.dtype
    total = x.size
    if total == 0:
        return x

    flat = x.reshape(-1)  # free for contiguous default-layout arrays
    if total % _LANE_W == 0:
        out_flat = _identity_copy_2d(flat, total // _LANE_W, dtype)
    else:
        out_flat = _identity_copy_1d(flat, total, dtype)
    return out_flat.reshape(orig_shape)


def identity_pallas_zero_copy(x):
    """Identity with output aliased onto the input: no DMA inside the kernel.

    Under jit with `x` donated this costs ~0 HBM bandwidth; otherwise XLA
    inserts one defensive copy (same cost as the streaming path).  Callers that
    donate `x` must not reuse it afterwards.
    """
    if x.size == 0:
        return x
    return pl.pallas_call(
        _noop_alias_kernel,
        out_shape=jax.ShapeDtypeStruct(x.shape, x.dtype),
        in_specs=[pl.BlockSpec(memory_space=pl.ANY)],
        out_specs=pl.BlockSpec(memory_space=pl.ANY),
        input_output_aliases={0: 0},
    )(x)


if __name__ == "__main__":
    key = jax.random.PRNGKey(0)
    k1, k2, k3 = jax.random.split(key, 3)

    # Primary: small NCHW input consistent with the (shape-agnostic) module.
    x = jax.random.normal(k1, (2, 4, 16, 16), dtype=jnp.float32)
    y = identity_pallas(x)
    jax.block_until_ready(y)
    assert y.shape == x.shape and y.dtype == x.dtype
    assert jnp.array_equal(y, x)

    # Misaligned element count: exercises the 1D path (no wrapper pad / slice).
    x_odd = jax.random.normal(k2, (3, 5, 7), dtype=jnp.float32)
    y_odd = identity_pallas(x_odd)
    jax.block_until_ready(y_odd)
    assert y_odd.shape == x_odd.shape and y_odd.dtype == x_odd.dtype
    assert jnp.array_equal(y_odd, x_odd)

    # Zero-copy aliased variant (no DMA issued inside the kernel).
    x2 = jax.random.normal(k3, (2, 4, 16, 16), dtype=jnp.float32)
    y2 = identity_pallas_zero_copy(x2)
    jax.block_until_ready(y2)
    assert y2.shape == x2.shape and y2.dtype == x2.dtype
    assert jnp.array_equal(y2, x2)

    print("KERNEL_OK")
</pallas_src>

<mosaic_0001>
module attributes {stable_mosaic.version = 11 : i64} {
  func.func @_copy_kernel(%arg0: i32, %arg1: memref<2x1024xf32, #tpu.memory_space<vmem>>, %arg2: memref<2x1024xf32, #tpu.memory_space<vmem>>) attributes {dimension_semantics = [#tpu.dimension_semantics<parallel>], iteration_bounds = array<i64: 1>, scalar_prefetch = 0 : i64, scratch_operands = 0 : i64, tpu.core_type = #tpu.core_type<tc>, window_params = [{transform_indices = @transform_0, window_bounds = array<i64: 2, 1024>}, {transform_indices = @transform_1, window_bounds = array<i64: 2, 1024>}]} {
    %c0 = arith.constant 0 : index
    %c0_0 = arith.constant 0 : index
    %0 = vector.load %arg1[%c0, %c0_0] : memref<2x1024xf32, #tpu.memory_space<vmem>>, vector<2x1024xf32>
    %c0_1 = arith.constant 0 : index
    %c0_2 = arith.constant 0 : index
    %1 = vector.load %arg2[%c0_1, %c0_2] : memref<2x1024xf32, #tpu.memory_space<vmem>>, vector<2x1024xf32>
    tpu.vector_store %arg2[%c0_1, %c0_2], %0 {strides = array<i32>} : memref<2x1024xf32, #tpu.memory_space<vmem>>, vector<2x1024xf32>,
    return
  }
  func.func @transform_0(%arg0: i32) -> (i32, i32) {
    %c0_i32 = arith.constant 0 : i32
    %c0_i32_0 = arith.constant 0 : i32
    return %arg0, %c0_i32 : i32, i32
  }
  func.func @transform_1(%arg0: i32) -> (i32, i32) {
    %c0_i32 = arith.constant 0 : i32
    %c0_i32_0 = arith.constant 0 : i32
    return %arg0, %c0_i32 : i32, i32
  }
}

</mosaic_0001>

<llo_original>
// kernel: tpu_custom_call.1
$region0: #{tpu_custom_call.1}
  #allocation0 [shape = 'u32[]', space=smem, size = 0x4, offset = 0x4, fixed_abs, tag = 'smem constant byte address 0x4 - core index']
  #allocation1 [shape = 'u32[144,128]{1,0:T(1,128)}', space=vmem, size = 0x12000, scoped, tag = 'internal scratch']
  %s0 = inlined_call_operand.hbm [shape: f32[2,1024], index: 0, kind: input, shape index: {}]
  %s1 = inlined_call_operand.hbm [shape: f32[2,1024], index: 1, kind: output, shape index: {}]
  %s2 = sld [smem:[#allocation0]]
  $region18: #{tpu_custom_call.1} parent=0
    _
  %s4 = ssub.s32 1, %s2
  %s5 = scalar_select 0, %s4, %s2
  $region1: #{tpu_custom_call.1} parent=0
    #allocation2 [shape = 'u8[8192]{0}', space=vmem, size = 0x2000, scoped, tag = 'input window, operand 0, single buffered']
    #allocation3 [shape = 's32[1]{0}', space=sflag, size = 0x4, scoped, tag = 'scoped memory for tpu_custom_call.1']
    #allocation4 [shape = 's32[1]{0}', space=sflag, size = 0x4, scoped, tag = 'scoped memory for tpu_custom_call.1']
    #allocation5 [shape = 'u8[8192]{0}', space=vmem, size = 0x2000, scoped, tag = 'output window, operand 0, single buffered']
    %6 = vsyncpa [#allocation3], 0
    %7 = vsyncpa [#allocation4], 0
    // Predicated region
    $region2: #{tpu_custom_call.1} parent=1 // pred_check
      _
    $region3: #{tpu_custom_call.1} parent=1 // pred_check_branch
      %9 = sbr.rel (0) target = $region5
    $region4: #{tpu_custom_call.1} parent=1 // pred_region
      %s11 = ssub.s32 256, 256
      %12 = vsyncadd [#allocation3], %s11
      %s14 = sshll.u32 [#allocation2], 4
      %s15 = int_to_ptr.vmem [resolvable:$true] %s14
      %17 = dma.hbm_to_vmem [thread:$0]  %s0, 256, %s15, [#allocation3]
    $region5: #{tpu_custom_call.1} parent=1 // pred_fallthru
      _
    // Predicated region
    $region6: #{tpu_custom_call.1} parent=1 // pred_check
      _
    $region7: #{tpu_custom_call.1} parent=1 // pred_check_branch
      %19 = sbr.rel (0) target = $region9
    $region8: #{tpu_custom_call.1} parent=1 // pred_region
      %20 = dma.done [#allocation3], 256
    $region9: #{tpu_custom_call.1} parent=1 // pred_fallthru
      _
    %v21 = vld [vmem:[#allocation2] sm:$0xff]
    %v22 = vld [vmem:[#allocation2 + $0x8] sm:$0xff]
    %23 = vst [vmem:[#allocation5] sm:$0xff] %v21
    %24 = vst [vmem:[#allocation5 + $0x8] sm:$0xff] %v22
    // Predicated region
    $region10: #{tpu_custom_call.1} parent=1 // pred_check
      _
    $region11: #{tpu_custom_call.1} parent=1 // pred_check_branch
      %26 = sbr.rel (0) target = $region13
    $region12: #{tpu_custom_call.1} parent=1 // pred_region
      %s28 = ssub.s32 256, 256
      %29 = vsyncadd [#allocation4], %s28
      %s31 = sshll.u32 [#allocation5], 4
      %s32 = int_to_ptr.vmem [resolvable:$true] %s31
      %34 = dma.vmem_to_hbm [thread:$0]  %s32, 256, %s1, [#allocation4]
    $region13: #{tpu_custom_call.1} parent=1 // pred_fallthru
      _
    // Predicated region
    $region14: #{tpu_custom_call.1} parent=1 // pred_check
      _
    $region15: #{tpu_custom_call.1} parent=1 // pred_check_branch
      %36 = sbr.rel (0) target = $region17
    $region16: #{tpu_custom_call.1} parent=1 // pred_region
      %37 = dma.done [#allocation4], 256
    $region17: #{tpu_custom_call.1} parent=1 // pred_fallthru
      _
    %38 = vsyncpa [#allocation3], 1
    %39 = vsyncpa [#allocation4], 1

</llo_original>
